<compile_context>
chip_gen: v7x
topology: tpu7x:2x2x1
jax: 0.10.0
libtpu: 0.0.40
codegen_flags: <defaults>
</compile_context>

<pallas_src>
import functools

import jax
import jax.numpy as jnp
from jax.experimental import pallas as pl
from jax.experimental.pallas import tpu as pltpu


# ---------------------------------------------------------------------------
# Fused kernel: conv1x1 + BN + ReLU  ->  dilated conv3x3 + BN + ReLU
# ---------------------------------------------------------------------------
def _fused_branch_kernel(x_ref, mask_ref, w1_ref, s1_ref, b1_ref,
                         w2_ref, s2_ref, b2_ref, o_ref,
                         h_scr, taps_scr, *, tap_offsets, chunks):
    """One image per grid step, channels-first, spatial flattened on lanes.

    x_ref    : (Cin,  P)       padded input, P = (H+2d)*(W+2d)
    mask_ref : (1,    P)       1.0 at valid pixels, 0.0 in the zero-pad halo
    w1_ref   : (Cmid, Cin)     1x1 conv weight (PyTorch (out, in) layout)
    s1/b1    : (Cmid, 1)       folded BN scale / bias (stage 1)
    w2_ref   : (Cout, 9*Cmid)  im2col-reshaped 3x3 conv weight
    s2/b2    : (Cout, 1)       folded BN scale / bias (stage 2)
    o_ref    : (Cout, F)       F = H*(W+2d); pad columns dropped by wrapper
    h_scr    : (Cmid, P+2d)    VMEM scratch: padded h + zero tail (tap overrun)
    taps_scr : (9*Cmid, Fc)    VMEM im2col buffer for one spatial chunk
    """
    cmid, hs = h_scr.shape
    p = x_ref.shape[1]

    # ---- stage 1: 1x1 conv + folded BN + ReLU, zeroed on the pad halo -----
    h = jnp.dot(w1_ref[...], x_ref[...], preferred_element_type=jnp.float32)
    h = jnp.maximum(h * s1_ref[...] + b1_ref[...], 0.0) * mask_ref[...]
    h_scr[:, 0:p] = h.astype(h_scr.dtype)
    h_scr[:, p:hs] = jnp.zeros((cmid, hs - p), h_scr.dtype)  # tap-overrun pad

    # ---- stage 2: dilated 3x3 conv as ONE K = 9*Cmid matmul per chunk -----
    for start, size in chunks:                    # static Python unroll
        for k, off in enumerate(tap_offsets):     # 9 static tap windows
            taps_scr[k * cmid:(k + 1) * cmid, 0:size] = (
                h_scr[:, off + start: off + start + size])
        acc = jnp.dot(w2_ref[...], taps_scr[:, 0:size],
                      preferred_element_type=jnp.float32)
        y = jnp.maximum(acc * s2_ref[...] + b2_ref[...], 0.0)
        o_ref[:, start:start + size] = y.astype(o_ref.dtype)


# ---------------------------------------------------------------------------
# Wrapper
# ---------------------------------------------------------------------------
@functools.partial(jax.jit,
                   static_argnames=("dilation", "compute_dtype", "chunk_lanes"))
def daspp_conv_branch(x_nchw, w1, s1, b1, w2, s2, b2, *, dilation,
                      compute_dtype=jnp.float32, chunk_lanes=4096):
    """x_nchw: (N, Cin, H, W) float32 -> (N, Cout, H, W) float32."""
    N, Cin, H, W = x_nchw.shape
    Cmid = w1.shape[0]
    Cout = w2.shape[0]
    d = int(dilation)

    Hb, Wb = H + 2 * d, W + 2 * d
    P = Hb * Wb            # padded, flattened spatial extent
    F = H * Wb             # "wide" output rows (pad columns kept, sliced later)
    Hs = P + 2 * d         # h-scratch lanes (+ zero tail for tap overrun)

    # stage-2 spatial chunking (bounds the im2col VMEM buffer)
    fc = min(F, int(chunk_lanes))
    chunks = tuple((s, min(fc, F - s)) for s in range(0, F, fc))
    tap_offsets = tuple(ky * d * Wb + kx * d
                        for ky in range(3) for kx in range(3))

    # -- host prologue: zero-pad spatially by d and flatten (NO transpose) --
    xp = jnp.pad(x_nchw, ((0, 0), (0, 0), (d, d), (d, d)))
    xp = xp.reshape(N, Cin, P).astype(compute_dtype)

    # valid-pixel mask over the padded, flattened spatial axis
    r = jnp.arange(Hb)[:, None]
    c = jnp.arange(Wb)[None, :]
    mask = ((r >= d) & (r < H + d) & (c >= d) & (c < W + d))
    mask = mask.reshape(1, P).astype(jnp.float32)

    # -- weights: PyTorch layouts, reshaped for the kernel --
    w1k = w1.astype(compute_dtype)                                  # (Cmid, Cin)
    w2k = jnp.transpose(w2, (0, 2, 3, 1)).reshape(Cout, 9 * Cmid)   # (Cout, 9*Cmid)
    w2k = w2k.astype(compute_dtype)
    s1k = s1.reshape(Cmid, 1).astype(jnp.float32)
    b1k = b1.reshape(Cmid, 1).astype(jnp.float32)
    s2k = s2.reshape(Cout, 1).astype(jnp.float32)
    b2k = b2.reshape(Cout, 1).astype(jnp.float32)

    kernel = functools.partial(_fused_branch_kernel,
                               tap_offsets=tap_offsets, chunks=chunks)

    itemsize = jnp.dtype(compute_dtype).itemsize
    vmem_est = (2 * Cin * P * itemsize            # double-buffered input block
                + 2 * Cout * F * 4                # double-buffered output block
                + Cmid * Hs * itemsize            # h scratch
                + 9 * Cmid * fc * itemsize        # im2col scratch
                + (Cmid * Cin + Cout * 9 * Cmid) * itemsize + P * 4)
    vmem_limit = int(max(16 * 2 ** 20, min(64 * 2 ** 20, 2 * vmem_est)))

    zw = pl.pallas_call(
        kernel,
        out_shape=jax.ShapeDtypeStruct((N, Cout, F), jnp.float32),
        grid=(N,),
        in_specs=[
            pl.BlockSpec((None, Cin, P), lambda n: (n, 0, 0)),
            pl.BlockSpec((1, P), lambda n: (0, 0)),
            pl.BlockSpec((Cmid, Cin), lambda n: (0, 0)),
            pl.BlockSpec((Cmid, 1), lambda n: (0, 0)),
            pl.BlockSpec((Cmid, 1), lambda n: (0, 0)),
            pl.BlockSpec((Cout, 9 * Cmid), lambda n: (0, 0)),
            pl.BlockSpec((Cout, 1), lambda n: (0, 0)),
            pl.BlockSpec((Cout, 1), lambda n: (0, 0)),
        ],
        out_specs=pl.BlockSpec((None, Cout, F), lambda n: (n, 0, 0)),
        scratch_shapes=[
            pltpu.VMEM((Cmid, Hs), compute_dtype),
            pltpu.VMEM((9 * Cmid, fc), compute_dtype),
        ],
        compiler_params=pltpu.CompilerParams(
            dimension_semantics=("parallel",),
            vmem_limit_bytes=vmem_limit),
    )(xp, mask, w1k, s1k, b1k, w2k, s2k, b2k)

    # -- host epilogue: drop the 2d pad columns of every row (NO transpose) --
    return zw.reshape(N, Cout, H, Wb)[:, :, :, :W]


# ---------------------------------------------------------------------------
# Parameter init (deterministic, mirrors c2_xavier_fill = kaiming_uniform a=1)
# ---------------------------------------------------------------------------
def init_params(key, in_channel, out_channel, inter_channel=None):
    if not inter_channel:
        inter_channel = in_channel // 2
    k1, k2 = jax.random.split(key)

    # conv1: 1x1, fan_in = in_channel ; PyTorch (out, in) layout
    bound1 = (3.0 / in_channel) ** 0.5
    w1 = jax.random.uniform(k1, (inter_channel, in_channel), jnp.float32,
                            -bound1, bound1)

    # conv2: 3x3, fan_in = inter_channel * 9 ; PyTorch (out, in, kh, kw) layout
    bound2 = (3.0 / (inter_channel * 9)) ** 0.5
    w2 = jax.random.uniform(k2, (out_channel, inter_channel, 3, 3), jnp.float32,
                            -bound2, bound2)

    # Fresh BN (eval mode): gamma=1, beta=0, mean=0, var=1, eps=1e-5
    eps = 1e-5
    s1 = jnp.full((inter_channel,), 1.0 / (1.0 + eps) ** 0.5, jnp.float32)
    b1 = jnp.zeros((inter_channel,), jnp.float32)
    s2 = jnp.full((out_channel,), 1.0 / (1.0 + eps) ** 0.5, jnp.float32)
    b2 = jnp.zeros((out_channel,), jnp.float32)
    return w1, s1, b1, w2, s2, b2


# ---------------------------------------------------------------------------
# Pure-JAX reference (lax conv) for correctness checking
# ---------------------------------------------------------------------------
def reference(x_nchw, w1, s1, b1, w2, s2, b2, dilation):
    w1_oihw = w1[:, :, None, None]                               # (Cmid,Cin,1,1)
    y = jax.lax.conv_general_dilated(
        x_nchw, w1_oihw, (1, 1), "VALID",
        dimension_numbers=("NCHW", "OIHW", "NCHW"))
    y = jnp.maximum(y * s1[None, :, None, None] + b1[None, :, None, None], 0.0)

    z = jax.lax.conv_general_dilated(
        y, w2, (1, 1),
        padding=[(dilation, dilation), (dilation, dilation)],
        rhs_dilation=(dilation, dilation),
        dimension_numbers=("NCHW", "OIHW", "NCHW"))
    z = jnp.maximum(z * s2[None, :, None, None] + b2[None, :, None, None], 0.0)
    return z


if __name__ == "__main__":
    key = jax.random.PRNGKey(0)
    kx, kp = jax.random.split(key)

    N, Cin, H, W = 2, 4, 16, 16
    out_channel, dilation = 4, 2

    x = jax.random.normal(kx, (N, Cin, H, W), jnp.float32)
    params = init_params(kp, Cin, out_channel)
    ref = reference(x, *params, dilation)

    # f32 compute path
    out = daspp_conv_branch(x, *params, dilation=dilation)
    out = jax.block_until_ready(out)
    assert out.shape == (N, out_channel, H, W), out.shape
    assert jnp.allclose(out, ref, rtol=1e-5, atol=1e-5), (
        float(jnp.max(jnp.abs(out - ref))))

    # exercise the in-kernel spatial chunking (multiple + partial chunks)
    out_chunked = daspp_conv_branch(x, *params, dilation=dilation,
                                    chunk_lanes=128)
    out_chunked = jax.block_until_ready(out_chunked)
    assert jnp.allclose(out_chunked, ref, rtol=1e-5, atol=1e-5), (
        float(jnp.max(jnp.abs(out_chunked - ref))))

    # bf16 compute path (f32 accumulation), looser tolerance
    out_bf16 = daspp_conv_branch(x, *params, dilation=dilation,
                                 compute_dtype=jnp.bfloat16)
    out_bf16 = jax.block_until_ready(out_bf16)
    assert jnp.allclose(out_bf16, ref, rtol=1e-1, atol=1e-1), (
        float(jnp.max(jnp.abs(out_bf16 - ref))))

    print("KERNEL_OK")
</pallas_src>

<mosaic_0001>
module attributes {stable_mosaic.version = 11 : i64} {
  func.func @_fused_branch_kernel(%arg0: i32, %arg1: memref<1x4x400xf32, #tpu.memory_space<vmem>>, %arg2: memref<1x400xf32, #tpu.memory_space<vmem>>, %arg3: memref<2x4xf32, #tpu.memory_space<vmem>>, %arg4: memref<2x1xf32, #tpu.memory_space<vmem>>, %arg5: memref<2x1xf32, #tpu.memory_space<vmem>>, %arg6: memref<4x18xf32, #tpu.memory_space<vmem>>, %arg7: memref<4x1xf32, #tpu.memory_space<vmem>>, %arg8: memref<4x1xf32, #tpu.memory_space<vmem>>, %arg9: memref<1x4x320xf32, #tpu.memory_space<vmem>>, %arg10: memref<2x404xf32, #tpu.memory_space<vmem>>, %arg11: memref<18x320xf32, #tpu.memory_space<vmem>>) attributes {dimension_semantics = [#tpu.dimension_semantics<parallel>], iteration_bounds = array<i64: 2>, scalar_prefetch = 0 : i64, scratch_operands = 2 : i64, tpu.core_type = #tpu.core_type<tc>, window_params = [{transform_indices = @transform_0, window_bounds = array<i64: 1, 4, 400>}, {pipeline_mode = #tpu.pipeline_mode<synchronous>, transform_indices = @transform_1, window_bounds = array<i64: 1, 400>}, {pipeline_mode = #tpu.pipeline_mode<synchronous>, transform_indices = @transform_2, window_bounds = array<i64: 2, 4>}, {pipeline_mode = #tpu.pipeline_mode<synchronous>, transform_indices = @transform_3, window_bounds = array<i64: 2, 1>}, {pipeline_mode = #tpu.pipeline_mode<synchronous>, transform_indices = @transform_4, window_bounds = array<i64: 2, 1>}, {pipeline_mode = #tpu.pipeline_mode<synchronous>, transform_indices = @transform_5, window_bounds = array<i64: 4, 18>}, {pipeline_mode = #tpu.pipeline_mode<synchronous>, transform_indices = @transform_6, window_bounds = array<i64: 4, 1>}, {pipeline_mode = #tpu.pipeline_mode<synchronous>, transform_indices = @transform_7, window_bounds = array<i64: 4, 1>}, {transform_indices = @transform_8, window_bounds = array<i64: 1, 4, 320>}]} {
    %c0 = arith.constant 0 : index
    %c0_0 = arith.constant 0 : index
    %0 = vector.load %arg3[%c0, %c0_0] : memref<2x4xf32, #tpu.memory_space<vmem>>, vector<2x4xf32>
    %c0_1 = arith.constant 0 : index
    %c0_2 = arith.constant 0 : index
    %c0_3 = arith.constant 0 : index
    %1 = vector.load %arg1[%c0_1, %c0_2, %c0_3] : memref<1x4x400xf32, #tpu.memory_space<vmem>>, vector<1x4x400xf32>
    %2 = vector.shape_cast %1 : vector<1x4x400xf32> to vector<4x400xf32>
    %cst = arith.constant dense<0.000000e+00> : vector<2x400xf32>
    %3 = tpu.matmul %0, %2, %cst {dimension_numbers = #tpu.dot_dimension_numbers<[1], [0], [0], [1], [0, 0, 1, 1], [], []>} : vector<2x4xf32>, vector<4x400xf32>, vector<2x400xf32> -> vector<2x400xf32>
    %c0_4 = arith.constant 0 : index
    %c0_5 = arith.constant 0 : index
    %4 = vector.load %arg4[%c0_4, %c0_5] : memref<2x1xf32, #tpu.memory_space<vmem>>, vector<2x1xf32>
    %5 = vector.broadcast %4 : vector<2x1xf32> to vector<2x400xf32>
    %6 = arith.mulf %3, %5 : vector<2x400xf32>
    %c0_6 = arith.constant 0 : index
    %c0_7 = arith.constant 0 : index
    %7 = vector.load %arg5[%c0_6, %c0_7] : memref<2x1xf32, #tpu.memory_space<vmem>>, vector<2x1xf32>
    %8 = vector.broadcast %7 : vector<2x1xf32> to vector<2x400xf32>
    %9 = arith.addf %6, %8 : vector<2x400xf32>
    %cst_8 = arith.constant 0.000000e+00 : f32
    %10 = vector.broadcast %cst_8 : f32 to vector<2x400xf32>
    %11 = arith.maximumf %9, %10 : vector<2x400xf32>
    %c0_9 = arith.constant 0 : index
    %c0_10 = arith.constant 0 : index
    %12 = vector.load %arg2[%c0_9, %c0_10] : memref<1x400xf32, #tpu.memory_space<vmem>>, vector<1x400xf32>
    %13 = vector.broadcast %12 : vector<1x400xf32> to vector<2x400xf32>
    %14 = arith.mulf %11, %13 : vector<2x400xf32>
    %c0_11 = arith.constant 0 : index
    %c0_12 = arith.constant 0 : index
    %15 = vector.load %arg10[%c0_11, %c0_12] : memref<2x404xf32, #tpu.memory_space<vmem>>, vector<2x400xf32>
    tpu.vector_store %arg10[%c0_11, %c0_12], %14 {strides = array<i32>} : memref<2x404xf32, #tpu.memory_space<vmem>>, vector<2x400xf32>,
    %cst_13 = arith.constant 0.000000e+00 : f32
    %16 = vector.broadcast %cst_13 : f32 to vector<2x4xf32>
    %c0_14 = arith.constant 0 : index
    %c400 = arith.constant 400 : index
    %17 = vector.load %arg10[%c0_14, %c400] : memref<2x404xf32, #tpu.memory_space<vmem>>, vector<2x4xf32>
    tpu.vector_store %arg10[%c0_14, %c400], %16 {strides = array<i32>} : memref<2x404xf32, #tpu.memory_space<vmem>>, vector<2x4xf32>,
    %c0_15 = arith.constant 0 : index
    %c0_16 = arith.constant 0 : index
    %18 = vector.load %arg10[%c0_15, %c0_16] : memref<2x404xf32, #tpu.memory_space<vmem>>, vector<2x320xf32>
    %c0_17 = arith.constant 0 : index
    %c0_18 = arith.constant 0 : index
    %19 = vector.load %arg11[%c0_17, %c0_18] : memref<18x320xf32, #tpu.memory_space<vmem>>, vector<2x320xf32>
    tpu.vector_store %arg11[%c0_17, %c0_18], %18 {strides = array<i32>} : memref<18x320xf32, #tpu.memory_space<vmem>>, vector<2x320xf32>,
    %c0_19 = arith.constant 0 : index
    %c2 = arith.constant 2 : index
    %20 = vector.load %arg10[%c0_19, %c2] : memref<2x404xf32, #tpu.memory_space<vmem>>, vector<2x320xf32>
    %c2_20 = arith.constant 2 : index
    %c0_21 = arith.constant 0 : index
    %21 = vector.load %arg11[%c2_20, %c0_21] : memref<18x320xf32, #tpu.memory_space<vmem>>, vector<2x320xf32>
    tpu.vector_store %arg11[%c2_20, %c0_21], %20 {strides = array<i32>} : memref<18x320xf32, #tpu.memory_space<vmem>>, vector<2x320xf32>,
    %c0_22 = arith.constant 0 : index
    %c4 = arith.constant 4 : index
    %22 = vector.load %arg10[%c0_22, %c4] : memref<2x404xf32, #tpu.memory_space<vmem>>, vector<2x320xf32>
    %c4_23 = arith.constant 4 : index
    %c0_24 = arith.constant 0 : index
    %23 = vector.load %arg11[%c4_23, %c0_24] : memref<18x320xf32, #tpu.memory_space<vmem>>, vector<2x320xf32>
    tpu.vector_store %arg11[%c4_23, %c0_24], %22 {strides = array<i32>} : memref<18x320xf32, #tpu.memory_space<vmem>>, vector<2x320xf32>,
    %c0_25 = arith.constant 0 : index
    %c40 = arith.constant 40 : index
    %24 = vector.load %arg10[%c0_25, %c40] : memref<2x404xf32, #tpu.memory_space<vmem>>, vector<2x320xf32>
    %c6 = arith.constant 6 : index
    %c0_26 = arith.constant 0 : index
    %25 = vector.load %arg11[%c6, %c0_26] : memref<18x320xf32, #tpu.memory_space<vmem>>, vector<2x320xf32>
    tpu.vector_store %arg11[%c6, %c0_26], %24 {strides = array<i32>} : memref<18x320xf32, #tpu.memory_space<vmem>>, vector<2x320xf32>,
    %c0_27 = arith.constant 0 : index
    %c42 = arith.constant 42 : index
    %26 = vector.load %arg10[%c0_27, %c42] : memref<2x404xf32, #tpu.memory_space<vmem>>, vector<2x320xf32>
    %c8 = arith.constant 8 : index
    %c0_28 = arith.constant 0 : index
    %27 = vector.load %arg11[%c8, %c0_28] : memref<18x320xf32, #tpu.memory_space<vmem>>, vector<2x320xf32>
    tpu.vector_store %arg11[%c8, %c0_28], %26 {strides = array<i32>} : memref<18x320xf32, #tpu.memory_space<vmem>>, vector<2x320xf32>,
    %c0_29 = arith.constant 0 : index
    %c44 = arith.constant 44 : index
    %28 = vector.load %arg10[%c0_29, %c44] : memref<2x404xf32, #tpu.memory_space<vmem>>, vector<2x320xf32>
    %c10 = arith.constant 10 : index
    %c0_30 = arith.constant 0 : index
    %29 = vector.load %arg11[%c10, %c0_30] : memref<18x320xf32, #tpu.memory_space<vmem>>, vector<2x320xf32>
    tpu.vector_store %arg11[%c10, %c0_30], %28 {strides = array<i32>} : memref<18x320xf32, #tpu.memory_space<vmem>>, vector<2x320xf32>,
    %c0_31 = arith.constant 0 : index
    %c80 = arith.constant 80 : index
    %30 = vector.load %arg10[%c0_31, %c80] : memref<2x404xf32, #tpu.memory_space<vmem>>, vector<2x320xf32>
    %c12 = arith.constant 12 : index
    %c0_32 = arith.constant 0 : index
    %31 = vector.load %arg11[%c12, %c0_32] : memref<18x320xf32, #tpu.memory_space<vmem>>, vector<2x320xf32>
    tpu.vector_store %arg11[%c12, %c0_32], %30 {strides = array<i32>} : memref<18x320xf32, #tpu.memory_space<vmem>>, vector<2x320xf32>,
    %c0_33 = arith.constant 0 : index
    %c82 = arith.constant 82 : index
    %32 = vector.load %arg10[%c0_33, %c82] : memref<2x404xf32, #tpu.memory_space<vmem>>, vector<2x320xf32>
    %c14 = arith.constant 14 : index
    %c0_34 = arith.constant 0 : index
    %33 = vector.load %arg11[%c14, %c0_34] : memref<18x320xf32, #tpu.memory_space<vmem>>, vector<2x320xf32>
    tpu.vector_store %arg11[%c14, %c0_34], %32 {strides = array<i32>} : memref<18x320xf32, #tpu.memory_space<vmem>>, vector<2x320xf32>,
    %c0_35 = arith.constant 0 : index
    %c84 = arith.constant 84 : index
    %34 = vector.load %arg10[%c0_35, %c84] : memref<2x404xf32, #tpu.memory_space<vmem>>, vector<2x320xf32>
    %c16 = arith.constant 16 : index
    %c0_36 = arith.constant 0 : index
    %35 = vector.load %arg11[%c16, %c0_36] : memref<18x320xf32, #tpu.memory_space<vmem>>, vector<2x320xf32>
    tpu.vector_store %arg11[%c16, %c0_36], %34 {strides = array<i32>} : memref<18x320xf32, #tpu.memory_space<vmem>>, vector<2x320xf32>,
    %c0_37 = arith.constant 0 : index
    %c0_38 = arith.constant 0 : index
    %36 = vector.load %arg6[%c0_37, %c0_38] : memref<4x18xf32, #tpu.memory_space<vmem>>, vector<4x18xf32>
    %c0_39 = arith.constant 0 : index
    %c0_40 = arith.constant 0 : index
    %37 = vector.load %arg11[%c0_39, %c0_40] : memref<18x320xf32, #tpu.memory_space<vmem>>, vector<18x320xf32>
    %cst_41 = arith.constant dense<0.000000e+00> : vector<4x320xf32>
    %38 = tpu.matmul %36, %37, %cst_41 {dimension_numbers = #tpu.dot_dimension_numbers<[1], [0], [0], [1], [0, 0, 1, 1], [], []>} : vector<4x18xf32>, vector<18x320xf32>, vector<4x320xf32> -> vector<4x320xf32>
    %c0_42 = arith.constant 0 : index
    %c0_43 = arith.constant 0 : index
    %39 = vector.load %arg7[%c0_42, %c0_43] : memref<4x1xf32, #tpu.memory_space<vmem>>, vector<4x1xf32>
    %40 = vector.broadcast %39 : vector<4x1xf32> to vector<4x320xf32>
    %41 = arith.mulf %38, %40 : vector<4x320xf32>
    %c0_44 = arith.constant 0 : index
    %c0_45 = arith.constant 0 : index
    %42 = vector.load %arg8[%c0_44, %c0_45] : memref<4x1xf32, #tpu.memory_space<vmem>>, vector<4x1xf32>
    %43 = vector.broadcast %42 : vector<4x1xf32> to vector<4x320xf32>
    %44 = arith.addf %41, %43 : vector<4x320xf32>
    %cst_46 = arith.constant 0.000000e+00 : f32
    %45 = vector.broadcast %cst_46 : f32 to vector<4x320xf32>
    %46 = arith.maximumf %44, %45 : vector<4x320xf32>
    %c0_47 = arith.constant 0 : index
    %c0_48 = arith.constant 0 : index
    %c0_49 = arith.constant 0 : index
    %47 = vector.load %arg9[%c0_47, %c0_48, %c0_49] : memref<1x4x320xf32, #tpu.memory_space<vmem>>, vector<1x4x320xf32>
    %48 = vector.shape_cast %47 : vector<1x4x320xf32> to vector<4x320xf32>
    %49 = vector.shape_cast %46 : vector<4x320xf32> to vector<1x4x320xf32>
    tpu.vector_store %arg9[%c0_47, %c0_48, %c0_49], %49 {strides = array<i32>} : memref<1x4x320xf32, #tpu.memory_space<vmem>>, vector<1x4x320xf32>,
    return
  }
  func.func @transform_0(%arg0: i32) -> (i32, i32, i32) {
    %c0_i32 = arith.constant 0 : i32
    %c0_i32_0 = arith.constant 0 : i32
    %c0_i32_1 = arith.constant 0 : i32
    return %arg0, %c0_i32, %c0_i32_0 : i32, i32, i32
  }
  func.func @transform_1(%arg0: i32) -> (i32, i32) {
    %c0_i32 = arith.constant 0 : i32
    %c0_i32_0 = arith.constant 0 : i32
    %c0_i32_1 = arith.constant 0 : i32
    return %c0_i32, %c0_i32_0 : i32, i32
  }
  func.func @transform_2(%arg0: i32) -> (i32, i32) {
    %c0_i32 = arith.constant 0 : i32
    %c0_i32_0 = arith.constant 0 : i32
    %c0_i32_1 = arith.constant 0 : i32
    return %c0_i32, %c0_i32_0 : i32, i32
  }
  func.func @transform_3(%arg0: i32) -> (i32, i32) {
    %c0_i32 = arith.constant 0 : i32
    %c0_i32_0 = arith.constant 0 : i32
    %c0_i32_1 = arith.constant 0 : i32
    return %c0_i32, %c0_i32_0 : i32, i32
  }
  func.func @transform_4(%arg0: i32) -> (i32, i32) {
    %c0_i32 = arith.constant 0 : i32
    %c0_i32_0 = arith.constant 0 : i32
    %c0_i32_1 = arith.constant 0 : i32
    return %c0_i32, %c0_i32_0 : i32, i32
  }
  func.func @transform_5(%arg0: i32) -> (i32, i32) {
    %c0_i32 = arith.constant 0 : i32
    %c0_i32_0 = arith.constant 0 : i32
    %c0_i32_1 = arith.constant 0 : i32
    return %c0_i32, %c0_i32_0 : i32, i32
  }
  func.func @transform_6(%arg0: i32) -> (i32, i32) {
    %c0_i32 = arith.constant 0 : i32
    %c0_i32_0 = arith.constant 0 : i32
    %c0_i32_1 = arith.constant 0 : i32
    return %c0_i32, %c0_i32_0 : i32, i32
  }
  func.func @transform_7(%arg0: i32) -> (i32, i32) {
    %c0_i32 = arith.constant 0 : i32
    %c0_i32_0 = arith.constant 0 : i32
    %c0_i32_1 = arith.constant 0 : i32
    return %c0_i32, %c0_i32_0 : i32, i32
  }
  func.func @transform_8(%arg0: i32) -> (i32, i32, i32) {
    %c0_i32 = arith.constant 0 : i32
    %c0_i32_0 = arith.constant 0 : i32
    %c0_i32_1 = arith.constant 0 : i32
    return %arg0, %c0_i32, %c0_i32_0 : i32, i32, i32
  }
}

</mosaic_0001>

<llo_original>
// kernel: daspp_conv_branch.1
$region0: #{daspp_conv_branch.1}
  #allocation0 [shape = 'u32[]', space=smem, size = 0x4, offset = 0x4, fixed_abs, tag = 'smem constant byte address 0x4 - core index']
  #allocation1 [shape = 'u32[144,128]{1,0:T(1,128)}', space=vmem, size = 0x12000, scoped, tag = 'internal scratch']
  #allocation2 [shape = 'f32[2,404]{1,0:T(2,128)}', space=vmem, size = 0x1000, scoped, tag = 'scratch operand']
  #allocation3 [shape = 'f32[18,320]{1,0:T(8,128)}', space=vmem, size = 0x9000, scoped, tag = 'scratch operand']
  %s0 = inlined_call_operand.vmem [shape: f32[2,4,400], index: 0, kind: input, shape index: {}]
  %s1 = inlined_call_operand.vmem [shape: f32[1,400], index: 1, kind: input, shape index: {}]
  %s2 = inlined_call_operand.vmem [shape: f32[2,4], index: 2, kind: input, shape index: {}]
  %s3 = inlined_call_operand.vmem [shape: f32[2,1], index: 3, kind: input, shape index: {}]
  %s4 = inlined_call_operand.vmem [shape: f32[2,1], index: 4, kind: input, shape index: {}]
  %s5 = inlined_call_operand.vmem [shape: f32[4,18], index: 5, kind: input, shape index: {}]
  %s6 = inlined_call_operand.vmem [shape: f32[4,1], index: 6, kind: input, shape index: {}]
  %s7 = inlined_call_operand.vmem [shape: f32[4,1], index: 7, kind: input, shape index: {}]
  %s8 = inlined_call_operand.vmem [shape: f32[2,4,320], index: 8, kind: output, shape index: {}]
  %s9 = sld [smem:[#allocation0]]
  $region65: #{daspp_conv_branch.1} parent=0
    _
  %s11 = ssub.s32 1, %s9
  %s12 = scalar_select 0, %s11, %s9
  loop: start=0, step=1, limit=4
  $region2: #{daspp_conv_branch.1} parent=0 // loop_pre_header
    _
  $region3: #{daspp_conv_branch.1} parent=0 // loop_header
    %s14 = sphi 0, %s18
    %p15 = scmp.ge.s32.totalorder %s14, 4
    %s24 = sphi 0, %s26
    %s27 = sphi 0, %s24
    %s28 = sphi 0, %s27
    %s44 = sphi 0, %s28
    %s48 = sphi 0, %s48
    %s50 = sphi 0, %s48
    %s51 = sphi 0, %s50
    %s65 = sphi 0, %s51
    %s69 = sphi 0, %s69
    %s71 = sphi 0, %s69
    %s72 = sphi 0, %s71
    %s86 = sphi 0, %s72
    %s90 = sphi 0, %s90
    %s92 = sphi 0, %s90
    %s93 = sphi 0, %s92
    %s107 = sphi 0, %s93
    %s111 = sphi 0, %s111
    %s113 = sphi 0, %s111
    %s114 = sphi 0, %s113
    %s128 = sphi 0, %s114
    %s132 = sphi 0, %s132
    %s134 = sphi 0, %s132
    %s135 = sphi 0, %s134
    %s149 = sphi 0, %s135
    %s153 = sphi 0, %s153
    %s155 = sphi 0, %s153
    %s156 = sphi 0, %s155
    %s170 = sphi 0, %s156
    %s174 = sphi 0, %s174
    %s176 = sphi 0, %s174
    %s177 = sphi 0, %s176
    %s191 = sphi 0, %s177
    %s197 = sphi 0, %s199
    %s200 = sphi 0, %s197
    %s201 = sphi 0, %s200
    %s217 = sphi 0, %s201
  $region4: #{daspp_conv_branch.1} parent=0 // loop_header_branch
    %17 = sbr.rel (%p15) target = $region8
  $region5: #{daspp_conv_branch.1} parent=0 // loop_body
    %s19 = ssub.s32 %s14, 1
    %s20 = ssub.s32 %s14, 2
    %s21 = sadd.s32 %s14, 1
    %s22 = ssub.s32 %s14, %s21
    %p23 = scmp.eq.s32.totalorder %s22, 0
    %s25 = sadd.s32 %s24, 1
    %s26 = scalar_select %p23, %s24, %s25
    %p29 = pneg %p23
    %p30 = scmp.eq.s32.totalorder %s14, 1
    %p31 = por %p29, %p30
    %p32 = scmp.ne.s32.totalorder %s24, %s27
    %p33 = scmp.eq.s32.totalorder %s14, 0
    %p34 = por %p32, %p33
    %p35 = scmp.ne.s32.totalorder %s24, %s27
    %p36 = scmp.eq.s32.totalorder %s19, 1
    %p37 = por %p35, %p36
    %p38 = scmp.ne.s32.totalorder %s27, %s28
    %p39 = scmp.eq.s32.totalorder %s19, 0
    %p40 = por %p38, %p39
    %p41 = scmp.ne.s32.totalorder %s27, %s28
    %p42 = scmp.eq.s32.totalorder %s20, 1
    %p43 = por %p41, %p42
    %p45 = scmp.ne.s32.totalorder %s28, %s44
    %p46 = scmp.eq.s32.totalorder %s20, 0
    %p47 = por %p45, %p46
    %s49 = sadd.s32 %s48, 1
    %p52 = scmp.eq.s32.totalorder %s14, 1
    %p53 = scmp.ne.s32.totalorder %s48, %s50
    %p54 = scmp.eq.s32.totalorder %s14, 0
    %p55 = por %p53, %p54
    %p56 = scmp.ne.s32.totalorder %s48, %s50
    %p57 = scmp.eq.s32.totalorder %s19, 1
    %p58 = por %p56, %p57
    %p59 = scmp.ne.s32.totalorder %s50, %s51
    %p60 = scmp.eq.s32.totalorder %s19, 0
    %p61 = por %p59, %p60
    %p62 = scmp.ne.s32.totalorder %s50, %s51
    %p63 = scmp.eq.s32.totalorder %s20, 1
    %p64 = por %p62, %p63
    %p66 = scmp.ne.s32.totalorder %s51, %s65
    %p67 = scmp.eq.s32.totalorder %s20, 0
    %p68 = por %p66, %p67
    %s70 = sadd.s32 %s69, 1
    %p73 = scmp.eq.s32.totalorder %s14, 1
    %p74 = scmp.ne.s32.totalorder %s69, %s71
    %p75 = scmp.eq.s32.totalorder %s14, 0
    %p76 = por %p74, %p75
    %p77 = scmp.ne.s32.totalorder %s69, %s71
    %p78 = scmp.eq.s32.totalorder %s19, 1
    %p79 = por %p77, %p78
    %p80 = scmp.ne.s32.totalorder %s71, %s72
    %p81 = scmp.eq.s32.totalorder %s19, 0
    %p82 = por %p80, %p81
    %p83 = scmp.ne.s32.totalorder %s71, %s72
    %p84 = scmp.eq.s32.totalorder %s20, 1
    %p85 = por %p83, %p84
    %p87 = scmp.ne.s32.totalorder %s72, %s86
    %p88 = scmp.eq.s32.totalorder %s20, 0
    %p89 = por %p87, %p88
    %s91 = sadd.s32 %s90, 1
    %p94 = scmp.eq.s32.totalorder %s14, 1
    %p95 = scmp.ne.s32.totalorder %s90, %s92
    %p96 = scmp.eq.s32.totalorder %s14, 0
    %p97 = por %p95, %p96
    %p98 = scmp.ne.s32.totalorder %s90, %s92
    %p99 = scmp.eq.s32.totalorder %s19, 1
    %p100 = por %p98, %p99
    %p101 = scmp.ne.s32.totalorder %s92, %s93
    %p102 = scmp.eq.s32.totalorder %s19, 0
    %p103 = por %p101, %p102
    %p104 = scmp.ne.s32.totalorder %s92, %s93
    %p105 = scmp.eq.s32.totalorder %s20, 1
    %p106 = por %p104, %p105
    %p108 = scmp.ne.s32.totalorder %s93, %s107
    %p109 = scmp.eq.s32.totalorder %s20, 0
    %p110 = por %p108, %p109
    %s112 = sadd.s32 %s111, 1
    %p115 = scmp.eq.s32.totalorder %s14, 1
    %p116 = scmp.ne.s32.totalorder %s111, %s113
    %p117 = scmp.eq.s32.totalorder %s14, 0
    %p118 = por %p116, %p117
    %p119 = scmp.ne.s32.totalorder %s111, %s113
    %p120 = scmp.eq.s32.totalorder %s19, 1
    %p121 = por %p119, %p120
    %p122 = scmp.ne.s32.totalorder %s113, %s114
    %p123 = scmp.eq.s32.totalorder %s19, 0
    %p124 = por %p122, %p123
    %p125 = scmp.ne.s32.totalorder %s113, %s114
    %p126 = scmp.eq.s32.totalorder %s20, 1
    %p127 = por %p125, %p126
    %p129 = scmp.ne.s32.totalorder %s114, %s128
    %p130 = scmp.eq.s32.totalorder %s20, 0
    %p131 = por %p129, %p130
    %s133 = sadd.s32 %s132, 1
    %p136 = scmp.eq.s32.totalorder %s14, 1
    %p137 = scmp.ne.s32.totalorder %s132, %s134
    %p138 = scmp.eq.s32.totalorder %s14, 0
    %p139 = por %p137, %p138
    %p140 = scmp.ne.s32.totalorder %s132, %s134
    %p141 = scmp.eq.s32.totalorder %s19, 1
    %p142 = por %p140, %p141
    %p143 = scmp.ne.s32.totalorder %s134, %s135
    %p144 = scmp.eq.s32.totalorder %s19, 0
    %p145 = por %p143, %p144
    %p146 = scmp.ne.s32.totalorder %s134, %s135
    %p147 = scmp.eq.s32.totalorder %s20, 1
    %p148 = por %p146, %p147
    %p150 = scmp.ne.s32.totalorder %s135, %s149
    %p151 = scmp.eq.s32.totalorder %s20, 0
    %p152 = por %p150, %p151
    %s154 = sadd.s32 %s153, 1
    %p157 = scmp.eq.s32.totalorder %s14, 1
    %p158 = scmp.ne.s32.totalorder %s153, %s155
    %p159 = scmp.eq.s32.totalorder %s14, 0
    %p160 = por %p158, %p159
    %p161 = scmp.ne.s32.totalorder %s153, %s155
    %p162 = scmp.eq.s32.totalorder %s19, 1
    %p163 = por %p161, %p162
    %p164 = scmp.ne.s32.totalorder %s155, %s156
    %p165 = scmp.eq.s32.totalorder %s19, 0
    %p166 = por %p164, %p165
    %p167 = scmp.ne.s32.totalorder %s155, %s156
    %p168 = scmp.eq.s32.totalorder %s20, 1
    %p169 = por %p167, %p168
    %p171 = scmp.ne.s32.totalorder %s156, %s170
    %p172 = scmp.eq.s32.totalorder %s20, 0
    %p173 = por %p171, %p172
    %s175 = sadd.s32 %s174, 1
    %p178 = scmp.eq.s32.totalorder %s14, 1
    %p179 = scmp.ne.s32.totalorder %s174, %s176
    %p180 = scmp.eq.s32.totalorder %s14, 0
    %p181 = por %p179, %p180
    %p182 = scmp.ne.s32.totalorder %s174, %s176
    %p183 = scmp.eq.s32.totalorder %s19, 1
    %p184 = por %p182, %p183
    %p185 = scmp.ne.s32.totalorder %s176, %s177
    %p186 = scmp.eq.s32.totalorder %s19, 0
    %p187 = por %p185, %p186
    %p188 = scmp.ne.s32.totalorder %s176, %s177
    %p189 = scmp.eq.s32.totalorder %s20, 1
    %p190 = por %p188, %p189
    %p192 = scmp.ne.s32.totalorder %s177, %s191
    %p193 = scmp.eq.s32.totalorder %s20, 0
    %p194 = por %p192, %p193
    %s195 = ssub.s32 %s14, %s21
    %p196 = scmp.eq.s32.totalorder %s195, 0
    %s198 = sadd.s32 %s197, 1
    %s199 = scalar_select %p196, %s197, %s198
    %p202 = pneg %p196
    %p203 = scmp.eq.s32.totalorder %s14, 1
    %p204 = por %p202, %p203
    %p205 = scmp.ne.s32.totalorder %s197, %s200
    %p206 = scmp.eq.s32.totalorder %s14, 0
    %p207 = por %p205, %p206
    %p208 = scmp.ne.s32.totalorder %s197, %s200
    %p209 = scmp.eq.s32.totalorder %s19, 1
    %p210 = por %p208, %p209
    %p211 = scmp.ne.s32.totalorder %s200, %s201
    %p212 = scmp.eq.s32.totalorder %s19, 0
    %p213 = por %p211, %p212
    %p214 = scmp.ne.s32.totalorder %s200, %s201
    %p215 = scmp.eq.s32.totalorder %s20, 1
    %p216 = por %p214, %p215
    %p218 = scmp.ne.s32.totalorder %s201, %s217
    %p219 = scmp.eq.s32.totalorder %s20, 0
    %p220 = por %p218, %p219
    %p221 = scmp.le.s32.totalorder 1, %s14
    %p222 = scmp.lt.s32.totalorder %s14, 3
    %p223 = pnand %p221, %p222
    %p224 = pneg %p223
    // Predicated region
    $region9: #{daspp_conv_branch.1} parent=5 // pred_check
      _
    $region10: #{daspp_conv_branch.1} parent=5 // pred_check_branch
      %226 = sbr.rel (%p223) target = $region12
    $region11: #{daspp_conv_branch.1} parent=5 // pred_region
      %s227 = ssub.s32 %s14, 1
      // Predicated region
      $region13: #{daspp_conv_branch.1} parent=11 // pred_check
        %p228 = pneg %p61
      $region14: #{daspp_conv_branch.1} parent=11 // pred_check_branch
        %230 = sbr.rel (%p228) target = $region16
      $region15: #{daspp_conv_branch.1} parent=11 // pred_region
        _
      $region16: #{daspp_conv_branch.1} parent=11 // pred_fallthru
        _
      // Predicated region
      $region17: #{daspp_conv_branch.1} parent=11 // pred_check
        %p231 = pneg %p82
      $region18: #{daspp_conv_branch.1} parent=11 // pred_check_branch
        %233 = sbr.rel (%p231) target = $region20
      $region19: #{daspp_conv_branch.1} parent=11 // pred_region
        _
      $region20: #{daspp_conv_branch.1} parent=11 // pred_fallthru
        _
      // Predicated region
      $region21: #{daspp_conv_branch.1} parent=11 // pred_check
        %p234 = pneg %p103
      $region22: #{daspp_conv_branch.1} parent=11 // pred_check_branch
        %236 = sbr.rel (%p234) target = $region24
      $region23: #{daspp_conv_branch.1} parent=11 // pred_region
        _
      $region24: #{daspp_conv_branch.1} parent=11 // pred_fallthru
        _
      // Predicated region
      $region25: #{daspp_conv_branch.1} parent=11 // pred_check
        %p237 = pneg %p124
      $region26: #{daspp_conv_branch.1} parent=11 // pred_check_branch
        %239 = sbr.rel (%p237) target = $region28
      $region27: #{daspp_conv_branch.1} parent=11 // pred_region
        _
      $region28: #{daspp_conv_branch.1} parent=11 // pred_fallthru
        _
      // Predicated region
      $region29: #{daspp_conv_branch.1} parent=11 // pred_check
        %p240 = pneg %p145
      $region30: #{daspp_conv_branch.1} parent=11 // pred_check_branch
        %242 = sbr.rel (%p240) target = $region32
      $region31: #{daspp_conv_branch.1} parent=11 // pred_region
        _
      $region32: #{daspp_conv_branch.1} parent=11 // pred_fallthru
        _
      // Predicated region
      $region33: #{daspp_conv_branch.1} parent=11 // pred_check
        %p243 = pneg %p166
      $region34: #{daspp_conv_branch.1} parent=11 // pred_check_branch
        %245 = sbr.rel (%p243) target = $region36
      $region35: #{daspp_conv_branch.1} parent=11 // pred_region
        _
      $region36: #{daspp_conv_branch.1} parent=11 // pred_fallthru
        _
      // Predicated region
      $region37: #{daspp_conv_branch.1} parent=11 // pred_check
        %p246 = pneg %p187
      $region38: #{daspp_conv_branch.1} parent=11 // pred_check_branch
        %248 = sbr.rel (%p246) target = $region40
      $region39: #{daspp_conv_branch.1} parent=11 // pred_region
        _
      $region40: #{daspp_conv_branch.1} parent=11 // pred_fallthru
        _
    $region12: #{daspp_conv_branch.1} parent=5 // pred_fallthru
      _
    %p249 = scmp.lt.s32.totalorder %s14, 2
    // Predicated region
    $region41: #{daspp_conv_branch.1} parent=5 // pred_check
      %p250 = pneg %p249
    $region42: #{daspp_conv_branch.1} parent=5 // pred_check_branch
      %252 = sbr.rel (%p250) target = $region44
    $region43: #{daspp_conv_branch.1} parent=5 // pred_region
      // Predicated region
      $region45: #{daspp_conv_branch.1} parent=43 // pred_check
        %p253 = pneg %p34
      $region46: #{daspp_conv_branch.1} parent=43 // pred_check_branch
        %255 = sbr.rel (%p253) target = $region48
      $region47: #{daspp_conv_branch.1} parent=43 // pred_region
        %p256 = scmp.lt.s32.totalorder %s14, 1
        %s257 = scalar_select %p256, %s14, 1
        %s258 = smul.addr %s257, 4
        %s259 = smul.addr %s258, 4
        %s260 = scalar_lea.vmem %s0, %s259
      $region48: #{daspp_conv_branch.1} parent=43 // pred_fallthru
        _
    $region44: #{daspp_conv_branch.1} parent=5 // pred_fallthru
      _
    %p261 = scmp.le.s32.totalorder 1, %s14
    %p262 = scmp.lt.s32.totalorder %s14, 3
    %p263 = pnand %p261, %p262
    %p264 = pneg %p263
    // Predicated region
    $region49: #{daspp_conv_branch.1} parent=5 // pred_check
      _
    $region50: #{daspp_conv_branch.1} parent=5 // pred_check_branch
      %266 = sbr.rel (%p263) target = $region52
    $region51: #{daspp_conv_branch.1} parent=5 // pred_region
      %s267 = ssub.s32 %s14, 1
      %p268 = scmp.lt.s32.totalorder %s19, 1
      %s269 = scalar_select %p268, %s19, 1
      %s270 = smul.addr %s269, 4
      %s271 = smul.addr %s270, 4
      %s272 = scalar_lea.vmem %s0, %s271
      %p273 = pneg %p40
      %p274 = pneg %p37
      %p275 = pneg %p61
      %p276 = pneg %p58
      %p277 = pneg %p82
      %p278 = pneg %p79
      %p279 = pneg %p103
      %p280 = pneg %p100
      %p281 = pneg %p124
      %p282 = pneg %p121
      %p283 = pneg %p145
      %p284 = pneg %p142
      %p285 = pneg %p166
      %p286 = pneg %p163
      %p287 = pneg %p187
      %p288 = pneg %p184
      %p289 = pneg %p213
      %p290 = pneg %p210
      %p291 = scmp.lt.s32.totalorder %s19, 1
      %s292 = scalar_select %p291, %s19, 1
      %s293 = smul.addr %s292, 3
      %s294 = smul.addr %s293, 4
      %s295 = scalar_lea.vmem %s8, %s294
      %p296 = scmp.lt.s32.totalorder %s19, 1
      %s297 = scalar_select %p296, %s19, 1
      %s298 = smul.addr %s297, 4
      %s299 = smul.addr %s298, 4
      %s300 = scalar_lea.vmem %s0, %s299
      %p301 = scmp.lt.s32.totalorder %s19, 1
      %s302 = scalar_select %p301, %s19, 1
      %s303 = smul.addr %s302, 3
      %s304 = smul.addr %s303, 4
      %s305 = scalar_lea.vmem %s8, %s304
      %v306 = vld [vmem:[%s2] sm:$0x3]
      %v307 = vld [vmem:[%s300] sm:$0xff]
      %v308 = vld [vmem:[%s300 + $0x8] sm:$0xff]
      %v311 = vcombine.high %v307, %v307
      %v312 = vcombine.high %v308, %v308
      %vm313 = vcmask 31744
      %v315 = vsel %vm313, %v306, 0
      %vm317 = vcmask 1043456
      %v318 = vsel %vm317, %v307, 0
      %v320 = vsel %vm317, %v311, 0
      %v322 = vsel %vm317, %v308, 0
      %v324 = vsel %vm317, %v312, 0
      %326 = vmatprep.subr.mxu0 %v320
      %327 = vmatpush1.msra.mxu0 %v318
      %328 = vmatprep.subr.mxu0 0.0
      %329 = vmatpush1.msra.mxu0 0.0
      %330 = vmatprep.subr.mxu0 0.0
      %331 = vmatpush1.msra.mxu0 0.0
      %332 = vmatprep.subr.mxu0 0.0
      %333 = vmatpush1.msra.mxu0 0.0
      %334 = vmatprep.subr.mxu0 0.0
      %335 = vmatpush1.msra.mxu0 0.0
      %336 = vmatprep.subr.mxu0 0.0
      %337 = vmatpush1.msra.mxu0 0.0
      %338 = vmatprep.subr.mxu0 0.0
      %339 = vmatpush1.msra.mxu0 0.0
      %340 = vmatprep.subr.mxu0 0.0
      %341 = vmatpush1.msra.mxu0 0.0
      %342 = vmatprep.subr.mxu0 0.0
      %343 = vmatpush1.msra.mxu0 0.0
      %344 = vmatprep.subr.mxu0 0.0
      %345 = vmatpush1.msra.mxu0 0.0
      %346 = vmatprep.subr.mxu0 0.0
      %347 = vmatpush1.msra.mxu0 0.0
      %348 = vmatprep.subr.mxu0 0.0
      %349 = vmatpush1.msra.mxu0 0.0
      %350 = vmatprep.subr.mxu0 0.0
      %351 = vmatpush1.msra.mxu0 0.0
      %352 = vmatprep.subr.mxu0 0.0
      %353 = vmatpush1.msra.mxu0 0.0
      %354 = vmatprep.subr.mxu0 0.0
      %355 = vmatpush1.msra.mxu0 0.0
      %356 = vmatprep.subr.mxu0 0.0
      %357 = vmatpush1.msra.mxu0 0.0
      %358 = vmatprep.subr.mxu0 0.0
      %359 = vmatpush1.msra.mxu0 0.0
      %360 = vmatprep.subr.mxu0 0.0
      %361 = vmatpush1.msra.mxu0 0.0
      %362 = vmatprep.subr.mxu0 0.0
      %363 = vmatpush1.msra.mxu0 0.0
      %364 = vmatprep.subr.mxu0 0.0
      %365 = vmatpush1.msra.mxu0 0.0
      %366 = vmatprep.subr.mxu0 0.0
      %367 = vmatpush1.msra.mxu0 0.0
      %368 = vmatprep.subr.mxu0 0.0
      %369 = vmatpush1.msra.mxu0 0.0
      %370 = vmatprep.subr.mxu0 0.0
      %371 = vmatpush1.msra.mxu0 0.0
      %372 = vmatprep.subr.mxu0 0.0
      %373 = vmatpush1.msra.mxu0 0.0
      %374 = vmatprep.subr.mxu0 0.0
      %375 = vmatpush1.msra.mxu0 0.0
      %376 = vmatprep.subr.mxu0 0.0
      %377 = vmatpush1.msra.mxu0 0.0
      %378 = vmatprep.subr.mxu0 0.0
      %379 = vmatpush1.msra.mxu0 0.0
      %380 = vmatprep.subr.mxu0 0.0
      %381 = vmatpush1.msra.mxu0 0.0
      %382 = vmatprep.subr.mxu0 0.0
      %383 = vmatpush1.msra.mxu0 0.0
      %384 = vmatprep.subr.mxu0 0.0
      %385 = vmatpush1.msra.mxu0 0.0
      %386 = vmatprep.subr.mxu0 0.0
      %387 = vmatpush1.msra.mxu0 0.0
      %388 = vmatprep.subr.mxu0 0.0
      %389 = vmatpush1.msra.mxu0 0.0
      %390 = vmatprep.mubr.f32.mxu0 0.0
      %391 = vmatmul.mubr.f32.gmra.mrb[0].mxu0 %v315
      %v392 = vpop.f32.mrb[0].mxu0
      %v393 = vadd.f32 0.0, %v392
      %v394 = vpop.f32.mrb[0].mxu0
      %v395 = vadd.f32 0.0, %v394
      %396 = vdwg.mxu0
      %397 = vmatprep.subr.mxu0 %v324
      %398 = vmatpush1.msra.mxu0 %v322
      %399 = vmatprep.subr.mxu0 0.0
      %400 = vmatpush1.msra.mxu0 0.0
      %401 = vmatprep.subr.mxu0 0.0
      %402 = vmatpush1.msra.mxu0 0.0
      %403 = vmatprep.subr.mxu0 0.0
      %404 = vmatpush1.msra.mxu0 0.0
      %405 = vmatprep.subr.mxu0 0.0
      %406 = vmatpush1.msra.mxu0 0.0
      %407 = vmatprep.subr.mxu0 0.0
      %408 = vmatpush1.msra.mxu0 0.0
      %409 = vmatprep.subr.mxu0 0.0
      %410 = vmatpush1.msra.mxu0 0.0
      %411 = vmatprep.subr.mxu0 0.0
      %412 = vmatpush1.msra.mxu0 0.0
      %413 = vmatprep.subr.mxu0 0.0
      %414 = vmatpush1.msra.mxu0 0.0
      %415 = vmatprep.subr.mxu0 0.0
      %416 = vmatpush1.msra.mxu0 0.0
      %417 = vmatprep.subr.mxu0 0.0
      %418 = vmatpush1.msra.mxu0 0.0
      %419 = vmatprep.subr.mxu0 0.0
      %420 = vmatpush1.msra.mxu0 0.0
      %421 = vmatprep.subr.mxu0 0.0
      %422 = vmatpush1.msra.mxu0 0.0
      %423 = vmatprep.subr.mxu0 0.0
      %424 = vmatpush1.msra.mxu0 0.0
      %425 = vmatprep.subr.mxu0 0.0
      %426 = vmatpush1.msra.mxu0 0.0
      %427 = vmatprep.subr.mxu0 0.0
      %428 = vmatpush1.msra.mxu0 0.0
      %429 = vmatprep.subr.mxu0 0.0
      %430 = vmatpush1.msra.mxu0 0.0
      %431 = vmatprep.subr.mxu0 0.0
      %432 = vmatpush1.msra.mxu0 0.0
      %433 = vmatprep.subr.mxu0 0.0
      %434 = vmatpush1.msra.mxu0 0.0
      %435 = vmatprep.subr.mxu0 0.0
      %436 = vmatpush1.msra.mxu0 0.0
      %437 = vmatprep.subr.mxu0 0.0
      %438 = vmatpush1.msra.mxu0 0.0
      %439 = vmatprep.subr.mxu0 0.0
      %440 = vmatpush1.msra.mxu0 0.0
      %441 = vmatprep.subr.mxu0 0.0
      %442 = vmatpush1.msra.mxu0 0.0
      %443 = vmatprep.subr.mxu0 0.0
      %444 = vmatpush1.msra.mxu0 0.0
      %445 = vmatprep.subr.mxu0 0.0
      %446 = vmatpush1.msra.mxu0 0.0
      %447 = vmatprep.subr.mxu0 0.0
      %448 = vmatpush1.msra.mxu0 0.0
      %449 = vmatprep.subr.mxu0 0.0
      %450 = vmatpush1.msra.mxu0 0.0
      %451 = vmatprep.subr.mxu0 0.0
      %452 = vmatpush1.msra.mxu0 0.0
      %453 = vmatprep.subr.mxu0 0.0
      %454 = vmatpush1.msra.mxu0 0.0
      %455 = vmatprep.subr.mxu0 0.0
      %456 = vmatpush1.msra.mxu0 0.0
      %457 = vmatprep.subr.mxu0 0.0
      %458 = vmatpush1.msra.mxu0 0.0
      %459 = vmatprep.subr.mxu0 0.0
      %460 = vmatpush1.msra.mxu0 0.0
      %461 = vmatprep.mubr.f32.mxu0 0.0
      %462 = vmatmul.mubr.f32.gmra.mrb[0].mxu0 %v315
      %v463 = vpop.f32.mrb[0].mxu0
      %v464 = vadd.f32 0.0, %v463
      %v465 = vpop.f32.mrb[0].mxu0
      %v466 = vadd.f32 0.0, %v465
      %467 = vdwg.mxu0
      %v468 = vld [vmem:[%s3] sm:$0x3]
      %470 = vset.pattern.permute.xlu0 0
      %471 = vperm.xlu0 %470, %v468
      %v472 = vpop.permute.xlu0 %471
      %v474 = vmul.f32 %v393, %v472
      %v475 = vmul.f32 %v395, %v472
      %v476 = vmul.f32 %v464, %v472
      %v477 = vmul.f32 %v466, %v472
      %v478 = vld [vmem:[%s4] sm:$0x3]
      %480 = vset.pattern.permute.xlu0 0
      %481 = vperm.xlu0 %480, %v478
      %v482 = vpop.permute.xlu0 %481
      %v484 = vadd.f32 %v474, %v482
      %v485 = vadd.f32 %v475, %v482
      %v486 = vadd.f32 %v476, %v482
      %v487 = vadd.f32 %v477, %v482
      %v488 = vmax.f32 %v484, 0.0
      %v489 = vmax.f32 %v485, 0.0
      %v490 = vmax.f32 %v486, 0.0
      %v491 = vmax.f32 %v487, 0.0
      %v492 = vld [vmem:[%s1] sm:$0xf]
      %v494 = vlaneseq
      %v495 = vshrl.u32 %v494, 7
      %v496 = vsub.s32 0, %v495
      %v497 = vrot.slane %v492, %v496
      %v498 = vlaneseq
      %v499 = vshrl.u32 %v498, 7
      %v500 = vsub.s32 1, %v499
      %v501 = vrot.slane %v492, %v500
      %v502 = vlaneseq
      %v503 = vshrl.u32 %v502, 7
      %v504 = vsub.s32 2, %v503
      %v505 = vrot.slane %v492, %v504
      %v506 = vlaneseq
      %v507 = vshrl.u32 %v506, 7
      %v508 = vsub.s32 3, %v507
      %v509 = vrot.slane %v492, %v508
      %v514 = vmul.f32 %v488, %v497
      %v515 = vmul.f32 %v489, %v501
      %v516 = vmul.f32 %v490, %v505
      %v517 = vmul.f32 %v491, %v509
      %v522 = vcombine.low %v514, %v515
      %v523 = vcombine.low %v516, %v517
      %v525 = vunpack.c.l.s4 1983009808
      %v526 = vunpack.c.0.s8 %v525
      %v527 = vlaneseq
      %v528 = vshrl.u32 %v527, 7
      %v529 = vsub.s32 %v526, %v528
      %v530 = vrot.slane %v522, %v529
      %v532 = vunpack.c.l.s4 1983009808
      %v533 = vunpack.c.0.s8 %v532
      %v534 = vlaneseq
      %v535 = vshrl.u32 %v534, 7
      %v536 = vsub.s32 %v533, %v535
      %v537 = vrot.slane %v523, %v536
      %v538 = vcombine.low %v530, %v537
      %vm540 = vcmask 1041408
      %vm541 = vcmask 1043458
      %vm542 = vmor %vm541, %vm540
      %vm543 = vcmask 1045508
      %vm544 = vmor %vm543, %vm542
      %vm545 = vcmask 130054
      %vm546 = vmor %vm545, %vm544
      %547 = vst.msk [vmem:[#allocation2] sm:$0xff] %vm546, %v538
      %vm548 = vcmask 156800
      %549 = vst.msk [vmem:[#allocation2 + $0x6] sm:$0x3] %vm548, 0.0
      %v550 = vld [vmem:[#allocation2] sm:$0x3f]
      %v552 = vcombine.high %v550, %v550
      %v554 = vunpack.c.l.s4 1983009808
      %v555 = vunpack.c.0.s8 %v554
      %v556 = vlaneseq
      %v557 = vshrl.u32 %v556, 7
      %v558 = vsub.s32 %v555, %v557
      %v559 = vrot.slane %v550, %v558
      %v561 = vunpack.c.l.s4 1983009808
      %v562 = vunpack.c.0.s8 %v561
      %v563 = vlaneseq
      %v564 = vshrl.u32 %v563, 7
      %v565 = vsub.s32 %v562, %v564
      %v566 = vrot.slane %v552, %v565
      %v567 = vcombine.high %v559, %v559
      %571 = vst [vmem:[#allocation3] sm:$0x3] %v559
      %572 = vst [vmem:[#allocation3 + $0x8] sm:$0x3] %v567
      %vm573 = vcmask 517120
      %574 = vst.msk [vmem:[#allocation3 + $0x10] sm:$0x3] %vm573, %v566
      %v575 = vld [vmem:[#allocation2] sm:$0x3f]
      %v577 = vcombine.low %v575, %v575
      %v579 = vunpack.c.l.s4 1983009808
      %v580 = vunpack.c.0.s8 %v579
      %v581 = vlaneseq
      %v582 = vshrl.u32 %v581, 7
      %v583 = vsub.s32 %v580, %v582
      %v584 = vrot.slane %v577, %v583
      %v586 = vunpack.c.l.s4 1983009808
      %v587 = vunpack.c.0.s8 %v586
      %v588 = vlaneseq
      %v589 = vshrl.u32 %v588, 7
      %v590 = vsub.s32 %v587, %v589
      %v591 = vrot.slane %v575, %v590
      %v592 = vcombine.high %v584, %v584
      %593 = vrot.lane.b32.xlu0 %v584, 126
      %v594 = vpop.permute.xlu0 %593
      %595 = vrot.lane.b32.xlu0 %v592, 126
      %v596 = vpop.permute.xlu0 %595
      %597 = vrot.lane.b32.xlu0 %v591, 126
      %v598 = vpop.permute.xlu0 %597
      %vm599 = vcmask 1031168
      %v600 = vsel %vm599, %v594, %v596
      %v601 = vsel %vm599, %v596, %v598
      %605 = vst [vmem:[#allocation3] sm:$0xc] %v600
      %606 = vst [vmem:[#allocation3 + $0x8] sm:$0xc] %v601
      %vm607 = vcmask 519170
      %608 = vst.msk [vmem:[#allocation3 + $0x10] sm:$0xc] %vm607, %v598
      %v609 = vld [vmem:[#allocation2] sm:$0x3f]
      %v611 = vcombine.high %v609, %v609
      %v613 = vunpack.c.l.s4 1983009808
      %v614 = vunpack.c.0.s8 %v613
      %v615 = vlaneseq
      %v616 = vshrl.u32 %v615, 7
      %v617 = vsub.s32 %v614, %v616
      %v618 = vrot.slane %v609, %v617
      %v620 = vunpack.c.l.s4 1983009808
      %v621 = vunpack.c.0.s8 %v620
      %v622 = vlaneseq
      %v623 = vshrl.u32 %v622, 7
      %v624 = vsub.s32 %v621, %v623
      %v625 = vrot.slane %v611, %v624
      %v626 = vcombine.low %v618, %v618
      %v627 = vcombine.low %v625, %v625
      %628 = vrot.lane.b32.xlu0 %v626, 124
      %v629 = vpop.permute.xlu0 %628
      %630 = vrot.lane.b32.xlu0 %v618, 124
      %v631 = vpop.permute.xlu0 %630
      %632 = vrot.lane.b32.xlu0 %v627, 124
      %v633 = vpop.permute.xlu0 %632
      %vm634 = vcmask 1014784
      %v635 = vsel %vm634, %v629, %v631
      %v636 = vsel %vm634, %v631, %v633
      %640 = vst [vmem:[#allocation3] sm:$0x30] %v635
      %641 = vst [vmem:[#allocation3 + $0x8] sm:$0x30] %v636
      %vm642 = vcmask 521220
      %643 = vst.msk [vmem:[#allocation3 + $0x10] sm:$0x30] %vm642, %v633
      %v644 = vld [vmem:[#allocation2] sm:$0x3f]
      %v646 = vcombine.low %v644, %v644
      %v648 = vunpack.c.l.s4 1983009808
      %v649 = vunpack.c.0.s8 %v648
      %v650 = vlaneseq
      %v651 = vshrl.u32 %v650, 7
      %v652 = vsub.s32 %v649, %v651
      %v653 = vrot.slane %v646, %v652
      %v655 = vunpack.c.l.s4 1983009808
      %v656 = vunpack.c.0.s8 %v655
      %v657 = vlaneseq
      %v658 = vshrl.u32 %v657, 7
      %v659 = vsub.s32 %v656, %v658
      %v660 = vrot.slane %v644, %v659
      %v661 = vcombine.low %v653, %v653
      %v662 = vcombine.low %v660, %v660
      %663 = vrot.lane.b32.xlu0 %v661, 88
      %v664 = vpop.permute.xlu0 %663
      %665 = vrot.lane.b32.xlu0 %v653, 88
      %v666 = vpop.permute.xlu0 %665
      %667 = vrot.lane.b32.xlu0 %v662, 88
      %v668 = vpop.permute.xlu0 %667
      %vm669 = vcmask 719872
      %v670 = vsel %vm669, %v664, %v666
      %v671 = vsel %vm669, %v666, %v668
      %675 = vst [vmem:[#allocation3] sm:$0xc0] %v670
      %676 = vst [vmem:[#allocation3 + $0x8] sm:$0xc0] %v671
      %vm677 = vcmask 523270
      %678 = vst.msk [vmem:[#allocation3 + $0x10] sm:$0xc0] %vm677, %v668
      %v679 = vld [vmem:[#allocation2] sm:$0x3f]
      %v681 = vcombine.high %v679, %v679
      %v683 = vunpack.c.l.s4 1983009808
      %v684 = vunpack.c.0.s8 %v683
      %v685 = vlaneseq
      %v686 = vshrl.u32 %v685, 7
      %v687 = vsub.s32 %v684, %v686
      %v688 = vrot.slane %v679, %v687
      %v690 = vunpack.c.l.s4 1983009808
      %v691 = vunpack.c.0.s8 %v690
      %v692 = vlaneseq
      %v693 = vshrl.u32 %v692, 7
      %v694 = vsub.s32 %v691, %v693
      %v695 = vrot.slane %v681, %v694
      %v696 = vcombine.high %v688, %v688
      %697 = vrot.lane.b32.xlu0 %v688, 86
      %v698 = vpop.permute.xlu0 %697
      %699 = vrot.lane.b32.xlu0 %v696, 86
      %v700 = vpop.permute.xlu0 %699
      %701 = vrot.lane.b32.xlu0 %v695, 86
      %v702 = vpop.permute.xlu0 %701
      %vm703 = vcmask 703488
      %v704 = vsel %vm703, %v698, %v700
      %v705 = vsel %vm703, %v700, %v702
      %709 = vst [vmem:[#allocation3 + $0x18] sm:$0x3] %v704
      %710 = vst [vmem:[#allocation3 + $0x20] sm:$0x3] %v705
      %711 = vst.msk [vmem:[#allocation3 + $0x28] sm:$0x3] %vm573, %v702
      %v712 = vld [vmem:[#allocation2] sm:$0x3f]
      %v714 = vcombine.low %v712, %v712
      %v716 = vunpack.c.l.s4 1983009808
      %v717 = vunpack.c.0.s8 %v716
      %v718 = vlaneseq
      %v719 = vshrl.u32 %v718, 7
      %v720 = vsub.s32 %v717, %v719
      %v721 = vrot.slane %v714, %v720
      %v723 = vunpack.c.l.s4 1983009808
      %v724 = vunpack.c.0.s8 %v723
      %v725 = vlaneseq
      %v726 = vshrl.u32 %v725, 7
      %v727 = vsub.s32 %v724, %v726
      %v728 = vrot.slane %v712, %v727
      %v729 = vcombine.high %v721, %v721
      %730 = vrot.lane.b32.xlu0 %v721, 84
      %v731 = vpop.permute.xlu0 %730
      %732 = vrot.lane.b32.xlu0 %v729, 84
      %v733 = vpop.permute.xlu0 %732
      %734 = vrot.lane.b32.xlu0 %v728, 84
      %v735 = vpop.permute.xlu0 %734
      %vm736 = vcmask 687104
      %v737 = vsel %vm736, %v731, %v733
      %v738 = vsel %vm736, %v733, %v735
      %742 = vst [vmem:[#allocation3 + $0x18] sm:$0xc] %v737
      %743 = vst [vmem:[#allocation3 + $0x20] sm:$0xc] %v738
      %744 = vst.msk [vmem:[#allocation3 + $0x28] sm:$0xc] %vm607, %v735
      %v745 = vld [vmem:[#allocation2] sm:$0xff]
      %v747 = vcombine.high %v745, %v745
      %v749 = vunpack.c.l.s4 1983009808
      %v750 = vunpack.c.0.s8 %v749
      %v751 = vlaneseq
      %v752 = vshrl.u32 %v751, 7
      %v753 = vsub.s32 %v750, %v752
      %v754 = vrot.slane %v745, %v753
      %v756 = vunpack.c.l.s4 1983009808
      %v757 = vunpack.c.0.s8 %v756
      %v758 = vlaneseq
      %v759 = vshrl.u32 %v758, 7
      %v760 = vsub.s32 %v757, %v759
      %v761 = vrot.slane %v747, %v760
      %v762 = vcombine.low %v754, %v754
      %v763 = vcombine.low %v761, %v761
      %764 = vrot.lane.b32.xlu0 %v762, 48
      %v765 = vpop.permute.xlu0 %764
      %766 = vrot.lane.b32.xlu0 %v754, 48
      %v767 = vpop.permute.xlu0 %766
      %768 = vrot.lane.b32.xlu0 %v763, 48
      %v769 = vpop.permute.xlu0 %768
      %770 = vrot.lane.b32.xlu0 %v761, 48
      %v771 = vpop.permute.xlu0 %770
      %vm772 = vcmask 392192
      %v773 = vsel %vm772, %v765, %v767
      %v774 = vsel %vm772, %v767, %v769
      %v775 = vsel %vm772, %v769, %v771
      %779 = vst [vmem:[#allocation3 + $0x18] sm:$0x30] %v773
      %780 = vst [vmem:[#allocation3 + $0x20] sm:$0x30] %v774
      %781 = vst.msk [vmem:[#allocation3 + $0x28] sm:$0x30] %vm642, %v775
      %v782 = vld [vmem:[#allocation2] sm:$0xff]
      %v784 = vcombine.low %v782, %v782
      %v786 = vunpack.c.l.s4 1983009808
      %v787 = vunpack.c.0.s8 %v786
      %v788 = vlaneseq
      %v789 = vshrl.u32 %v788, 7
      %v790 = vsub.s32 %v787, %v789
      %v791 = vrot.slane %v784, %v790
      %v793 = vunpack.c.l.s4 1983009808
      %v794 = vunpack.c.0.s8 %v793
      %v795 = vlaneseq
      %v796 = vshrl.u32 %v795, 7
      %v797 = vsub.s32 %v794, %v796
      %v798 = vrot.slane %v782, %v797
      %v799 = vcombine.low %v791, %v791
      %v800 = vcombine.low %v798, %v798
      %801 = vrot.lane.b32.xlu0 %v799, 46
      %v802 = vpop.permute.xlu0 %801
      %803 = vrot.lane.b32.xlu0 %v791, 46
      %v804 = vpop.permute.xlu0 %803
      %805 = vrot.lane.b32.xlu0 %v800, 46
      %v806 = vpop.permute.xlu0 %805
      %807 = vrot.lane.b32.xlu0 %v798, 46
      %v808 = vpop.permute.xlu0 %807
      %vm809 = vcmask 375808
      %v810 = vsel %vm809, %v802, %v804
      %v811 = vsel %vm809, %v804, %v806
      %v812 = vsel %vm809, %v806, %v808
      %816 = vst [vmem:[#allocation3 + $0x18] sm:$0xc0] %v810
      %817 = vst [vmem:[#allocation3 + $0x20] sm:$0xc0] %v811
      %818 = vst.msk [vmem:[#allocation3 + $0x28] sm:$0xc0] %vm677, %v812
      %v819 = vld [vmem:[#allocation2] sm:$0xff]
      %v821 = vcombine.high %v819, %v819
      %v823 = vunpack.c.l.s4 1983009808
      %v824 = vunpack.c.0.s8 %v823
      %v825 = vlaneseq
      %v826 = vshrl.u32 %v825, 7
      %v827 = vsub.s32 %v824, %v826
      %v828 = vrot.slane %v819, %v827
      %v830 = vunpack.c.l.s4 1983009808
      %v831 = vunpack.c.0.s8 %v830
      %v832 = vlaneseq
      %v833 = vshrl.u32 %v832, 7
      %v834 = vsub.s32 %v831, %v833
      %v835 = vrot.slane %v821, %v834
      %v836 = vcombine.high %v828, %v828
      %v837 = vcombine.high %v835, %v835
      %838 = vrot.lane.b32.xlu0 %v828, 44
      %v839 = vpop.permute.xlu0 %838
      %840 = vrot.lane.b32.xlu0 %v836, 44
      %v841 = vpop.permute.xlu0 %840
      %842 = vrot.lane.b32.xlu0 %v835, 44
      %v843 = vpop.permute.xlu0 %842
      %844 = vrot.lane.b32.xlu0 %v837, 44
      %v845 = vpop.permute.xlu0 %844
      %vm846 = vcmask 359424
      %v847 = vsel %vm846, %v839, %v841
      %v848 = vsel %vm846, %v841, %v843
      %v849 = vsel %vm846, %v843, %v845
      %853 = vst [vmem:[#allocation3 + $0x30] sm:$0x3] %v847
      %854 = vst [vmem:[#allocation3 + $0x38] sm:$0x3] %v848
      %855 = vst.msk [vmem:[#allocation3 + $0x40] sm:$0x3] %vm573, %v849
      %v856 = vld [vmem:[%s5] sm:$0xf]
      %v857 = vld [vmem:[#allocation3] sm:$0xff]
      %v858 = vld [vmem:[#allocation3 + $0x8] sm:$0xff]
      %v859 = vld [vmem:[#allocation3 + $0x10] sm:$0xff]
      %v860 = vld [vmem:[#allocation3 + $0x18] sm:$0xff]
      %v861 = vld [vmem:[#allocation3 + $0x20] sm:$0xff]
      %v862 = vld [vmem:[#allocation3 + $0x28] sm:$0xff]
      %v863 = vld [vmem:[#allocation3 + $0x30] sm:$0x3]
      %v864 = vld [vmem:[#allocation3 + $0x38] sm:$0x3]
      %v865 = vld [vmem:[#allocation3 + $0x40] sm:$0x3]
      %vm866 = vcmask 146432
      %v868 = vsel %vm866, %v856, 0
      %v871 = vsel %vm540, %v863, 0
      %v874 = vsel %vm540, %v864, 0
      %v877 = vsel %vm540, %v865, 0
      %879 = vmatprep.subr.mxu0 %v858
      %880 = vmatpush1.msra.mxu0 %v857
      %881 = vmatprep.subr.mxu0 %v861
      %882 = vmatpush1.msra.mxu0 %v860
      %883 = vmatprep.subr.mxu0 %v874
      %884 = vmatpush1.msra.mxu0 %v871
      %885 = vmatprep.subr.mxu0 0.0
      %886 = vmatpush1.msra.mxu0 0.0
      %887 = vmatprep.subr.mxu0 0.0
      %888 = vmatpush1.msra.mxu0 0.0
      %889 = vmatprep.subr.mxu0 0.0
      %890 = vmatpush1.msra.mxu0 0.0
      %891 = vmatprep.subr.mxu0 0.0
      %892 = vmatpush1.msra.mxu0 0.0
      %893 = vmatprep.subr.mxu0 0.0
      %894 = vmatpush1.msra.mxu0 0.0
      %895 = vmatprep.subr.mxu0 0.0
      %896 = vmatpush1.msra.mxu0 0.0
      %897 = vmatprep.subr.mxu0 0.0
      %898 = vmatpush1.msra.mxu0 0.0
      %899 = vmatprep.subr.mxu0 0.0
      %900 = vmatpush1.msra.mxu0 0.0
      %901 = vmatprep.subr.mxu0 0.0
      %902 = vmatpush1.msra.mxu0 0.0
      %903 = vmatprep.subr.mxu0 0.0
      %904 = vmatpush1.msra.mxu0 0.0
      %905 = vmatprep.subr.mxu0 0.0
      %906 = vmatpush1.msra.mxu0 0.0
      %907 = vmatprep.subr.mxu0 0.0
      %908 = vmatpush1.msra.mxu0 0.0
      %909 = vmatprep.subr.mxu0 0.0
      %910 = vmatpush1.msra.mxu0 0.0
      %911 = vmatprep.subr.mxu0 0.0
      %912 = vmatpush1.msra.mxu0 0.0
      %913 = vmatprep.subr.mxu0 0.0
      %914 = vmatpush1.msra.mxu0 0.0
      %915 = vmatprep.subr.mxu0 0.0
      %916 = vmatpush1.msra.mxu0 0.0
      %917 = vmatprep.subr.mxu0 0.0
      %918 = vmatpush1.msra.mxu0 0.0
      %919 = vmatprep.subr.mxu0 0.0
      %920 = vmatpush1.msra.mxu0 0.0
      %921 = vmatprep.subr.mxu0 0.0
      %922 = vmatpush1.msra.mxu0 0.0
      %923 = vmatprep.subr.mxu0 0.0
      %924 = vmatpush1.msra.mxu0 0.0
      %925 = vmatprep.subr.mxu0 0.0
      %926 = vmatpush1.msra.mxu0 0.0
      %927 = vmatprep.subr.mxu0 0.0
      %928 = vmatpush1.msra.mxu0 0.0
      %929 = vmatprep.subr.mxu0 0.0
      %930 = vmatpush1.msra.mxu0 0.0
      %931 = vmatprep.subr.mxu0 0.0
      %932 = vmatpush1.msra.mxu0 0.0
      %933 = vmatprep.subr.mxu0 0.0
      %934 = vmatpush1.msra.mxu0 0.0
      %935 = vmatprep.subr.mxu0 0.0
      %936 = vmatpush1.msra.mxu0 0.0
      %937 = vmatprep.subr.mxu0 0.0
      %938 = vmatpush1.msra.mxu0 0.0
      %939 = vmatprep.subr.mxu0 0.0
      %940 = vmatpush1.msra.mxu0 0.0
      %941 = vmatprep.subr.mxu0 0.0
      %942 = vmatpush1.msra.mxu0 0.0
      %943 = vmatprep.mubr.f32.mxu0 0.0
      %944 = vmatmul.mubr.f32.gmra.mrb[0].mxu0 %v868
      %v945 = vpop.f32.mrb[0].mxu0
      %v946 = vadd.f32 0.0, %v945
      %v947 = vpop.f32.mrb[0].mxu0
      %v948 = vadd.f32 0.0, %v947
      %949 = vdwg.mxu0
      %950 = vmatprep.subr.mxu0 0.0
      %951 = vmatpush1.msra.mxu0 %v859
      %952 = vmatprep.subr.mxu0 0.0
      %953 = vmatpush1.msra.mxu0 %v862
      %954 = vmatprep.subr.mxu0 0.0
      %955 = vmatpush1.msra.mxu0 %v877
      %956 = vmatprep.subr.mxu0 0.0
      %957 = vmatpush1.msra.mxu0 0.0
      %958 = vmatprep.subr.mxu0 0.0
      %959 = vmatpush1.msra.mxu0 0.0
      %960 = vmatprep.subr.mxu0 0.0
      %961 = vmatpush1.msra.mxu0 0.0
      %962 = vmatprep.subr.mxu0 0.0
      %963 = vmatpush1.msra.mxu0 0.0
      %964 = vmatprep.subr.mxu0 0.0
      %965 = vmatpush1.msra.mxu0 0.0
      %966 = vmatprep.subr.mxu0 0.0
      %967 = vmatpush1.msra.mxu0 0.0
      %968 = vmatprep.subr.mxu0 0.0
      %969 = vmatpush1.msra.mxu0 0.0
      %970 = vmatprep.subr.mxu0 0.0
      %971 = vmatpush1.msra.mxu0 0.0
      %972 = vmatprep.subr.mxu0 0.0
      %973 = vmatpush1.msra.mxu0 0.0
      %974 = vmatprep.subr.mxu0 0.0
      %975 = vmatpush1.msra.mxu0 0.0
      %976 = vmatprep.subr.mxu0 0.0
      %977 = vmatpush1.msra.mxu0 0.0
      %978 = vmatprep.subr.mxu0 0.0
      %979 = vmatpush1.msra.mxu0 0.0
      %980 = vmatprep.subr.mxu0 0.0
      %981 = vmatpush1.msra.mxu0 0.0
      %982 = vmatprep.subr.mxu0 0.0
      %983 = vmatpush1.msra.mxu0 0.0
      %984 = vmatprep.subr.mxu0 0.0
      %985 = vmatpush1.msra.mxu0 0.0
      %986 = vmatprep.subr.mxu0 0.0
      %987 = vmatpush1.msra.mxu0 0.0
      %988 = vmatprep.subr.mxu0 0.0
      %989 = vmatpush1.msra.mxu0 0.0
      %990 = vmatprep.subr.mxu0 0.0
      %991 = vmatpush1.msra.mxu0 0.0
      %992 = vmatprep.subr.mxu0 0.0
      %993 = vmatpush1.msra.mxu0 0.0
      %994 = vmatprep.subr.mxu0 0.0
      %995 = vmatpush1.msra.mxu0 0.0
      %996 = vmatprep.subr.mxu0 0.0
      %997 = vmatpush1.msra.mxu0 0.0
      %998 = vmatprep.subr.mxu0 0.0
      %999 = vmatpush1.msra.mxu0 0.0
      %1000 = vmatprep.subr.mxu0 0.0
      %1001 = vmatpush1.msra.mxu0 0.0
      %1002 = vmatprep.subr.mxu0 0.0
      %1003 = vmatpush1.msra.mxu0 0.0
      %1004 = vmatprep.subr.mxu0 0.0
      %1005 = vmatpush1.msra.mxu0 0.0
      %1006 = vmatprep.subr.mxu0 0.0
      %1007 = vmatpush1.msra.mxu0 0.0
      %1008 = vmatprep.subr.mxu0 0.0
      %1009 = vmatpush1.msra.mxu0 0.0
      %1010 = vmatprep.subr.mxu0 0.0
      %1011 = vmatpush1.msra.mxu0 0.0
      %1012 = vmatprep.subr.mxu0 0.0
      %1013 = vmatpush1.msra.mxu0 0.0
      %1014 = vmatprep.mubr.f32.mxu0 0.0
      %1015 = vmatmul.mubr.f32.gmra.mrb[0].mxu0 %v868
      %v1016 = vpop.f32.mrb[0].mxu0
      %v1017 = vadd.f32 0.0, %v1016
      %v1018 = vpop.f32.mrb[0].mxu0
      %1019 = vdwg.mxu0
      %v1020 = vld [vmem:[%s6] sm:$0xf]
      %1022 = vset.pattern.permute.xlu0 0
      %1023 = vperm.xlu0 %1022, %v1020
      %v1024 = vpop.permute.xlu0 %1023
      %v1026 = vmul.f32 %v946, %v1024
      %v1027 = vmul.f32 %v948, %v1024
      %v1028 = vmul.f32 %v1017, %v1024
      %v1029 = vld [vmem:[%s7] sm:$0xf]
      %1031 = vset.pattern.permute.xlu0 0
      %1032 = vperm.xlu0 %1031, %v1029
      %v1033 = vpop.permute.xlu0 %1032
      %v1035 = vadd.f32 %v1026, %v1033
      %v1036 = vadd.f32 %v1027, %v1033
      %v1037 = vadd.f32 %v1028, %v1033
      %v1038 = vmax.f32 %v1035, 0.0
      %v1039 = vmax.f32 %v1036, 0.0
      %v1040 = vmax.f32 %v1037, 0.0
      %v1043 = vcombine.low %v1038, %v1039
      %1045 = vst [vmem:[%s305] sm:$0xff] %v1043
      %vm1046 = vcmask 519168
      %1047 = vst.msk [vmem:[%s305 + $0x8] sm:$0xf] %vm1046, %v1040
      %p1048 = scmp.lt.s32.totalorder %s19, 1
      %s1049 = scalar_select %p1048, %s19, 1
      %s1050 = smul.addr %s1049, 3
      %s1051 = smul.addr %s1050, 4
      %s1052 = scalar_lea.vmem %s8, %s1051
      // Predicated region
      $region53: #{daspp_conv_branch.1} parent=51 // pred_check
        %p1053 = pneg %p210
      $region54: #{daspp_conv_branch.1} parent=51 // pred_check_branch
        %1055 = sbr.rel (%p1053) target = $region56
      $region55: #{daspp_conv_branch.1} parent=51 // pred_region
        _
      $region56: #{daspp_conv_branch.1} parent=51 // pred_fallthru
        _
    $region52: #{daspp_conv_branch.1} parent=5 // pred_fallthru
      _
    %p1056 = scmp.le.s32.totalorder 2, %s14
    // Predicated region
    $region57: #{daspp_conv_branch.1} parent=5 // pred_check
      %p1057 = pneg %p1056
    $region58: #{daspp_conv_branch.1} parent=5 // pred_check_branch
      %1059 = sbr.rel (%p1057) target = $region60
    $region59: #{daspp_conv_branch.1} parent=5 // pred_region
      %s1060 = ssub.s32 %s14, 2
      // Predicated region
      $region61: #{daspp_conv_branch.1} parent=59 // pred_check
        %p1061 = pneg %p216
      $region62: #{daspp_conv_branch.1} parent=59 // pred_check_branch
        %1063 = sbr.rel (%p1061) target = $region64
      $region63: #{daspp_conv_branch.1} parent=59 // pred_region
        %p1064 = scmp.lt.s32.totalorder %s20, 1
        %s1065 = scalar_select %p1064, %s20, 1
        %s1066 = smul.addr %s1065, 3
        %s1067 = smul.addr %s1066, 4
        %s1068 = scalar_lea.vmem %s8, %s1067
      $region64: #{daspp_conv_branch.1} parent=59 // pred_fallthru
        _
    $region60: #{daspp_conv_branch.1} parent=5 // pred_fallthru
      _
  $region6: #{daspp_conv_branch.1} parent=0 // loop_footer
    %s18 = sadd.s32 1, %s14
  $region7: #{daspp_conv_branch.1} parent=0 // loop_footer_branch
    %13 = sbr.rel target = $region3
  $region8: #{daspp_conv_branch.1} parent=0 // loop_exit
    _

</llo_original>
